<compile_context>
chip_gen: v5e
topology: v5e:2x2
jax: 0.10.0
libtpu: 0.0.40
codegen_flags: <defaults>
</compile_context>

<pallas_src>
import functools

import jax
import jax.numpy as jnp
from jax.experimental import pallas as pl
from jax.experimental.pallas import tpu as pltpu


def _mlp_kernel(x_ref, w1_ref, b1_ref, w2_ref, b2_ref, w3_ref, b3_ref,
                w4_ref, b4_ref, o_ref):
    # cast the streamed f32 x tile to bf16 in-kernel (no extra wrapper-side HBM pass)
    x = x_ref[...].astype(jnp.bfloat16)
    # hidden layer 1: bf16 operands, f32 accumulation, bias + ReLU in f32
    h = jnp.dot(x, w1_ref[...], preferred_element_type=jnp.float32)
    h = jnp.maximum(h + b1_ref[...], 0.0).astype(jnp.bfloat16)
    # hidden layer 2
    h = jnp.dot(h, w2_ref[...], preferred_element_type=jnp.float32)
    h = jnp.maximum(h + b2_ref[...], 0.0).astype(jnp.bfloat16)
    # hidden layer 3
    h = jnp.dot(h, w3_ref[...], preferred_element_type=jnp.float32)
    h = jnp.maximum(h + b3_ref[...], 0.0).astype(jnp.bfloat16)
    # output layer (no activation); output width is lane-padded to 128
    o = jnp.dot(h, w4_ref[...], preferred_element_type=jnp.float32) + b4_ref[...]
    o_ref[...] = o.astype(o_ref.dtype)


def _round_up(n, m):
    return ((n + m - 1) // m) * m


def mlp_forward(x, params, *, num_classes, tb=512, trim=True, out_dtype=jnp.float32):
    """x: (B, input_size) f32 (or bf16). params: dict of transposed bf16 weights / f32 biases.

    Returns (B, num_classes) `out_dtype` if trim=True, else the lane-padded (B?, 128) slab
    (zero columns beyond num_classes) so downstream consumers can skip the HBM slice.
    """
    B, D = x.shape
    H = params["w1"].shape[1]          # 128
    Cpad = params["w4"].shape[1]       # padded num_classes (128)

    # Tiny batches: shrink the tile to round_up(B, 16) instead of padding to a huge tile
    # (16 = bf16 sublane packing granularity for the in-kernel bf16 activations).
    tb = max(16, min(tb, _round_up(B, 16)))
    n_tiles = pl.cdiv(B, tb)
    Bp = n_tiles * tb

    x_in = x
    if Bp != B:
        x_in = jnp.pad(x, ((0, Bp - B), (0, 0)))

    # Weights/biases: constant block index across the grid -> fetched once, stay resident.
    full = lambda shape: pl.BlockSpec(shape, lambda i: (0, 0))

    # x stream: deeper buffering only helps when the per-step tile is small and the grid
    # is long enough for the extra buffer to matter.
    if tb <= 128 and n_tiles >= 3:
        x_spec = pl.BlockSpec((tb, D), lambda i: (i, 0), pipeline_mode=pl.Buffered(3))
    else:
        x_spec = pl.BlockSpec((tb, D), lambda i: (i, 0))

    out_padded = pl.pallas_call(
        _mlp_kernel,
        out_shape=jax.ShapeDtypeStruct((Bp, Cpad), out_dtype),
        grid_spec=pltpu.PrefetchScalarGridSpec(
            num_scalar_prefetch=0,
            grid=(n_tiles,),
            in_specs=[
                x_spec,                                    # x tile (streams over batch)
                full((D, H)), full((1, H)),                # layer1
                full((H, H)), full((1, H)),                # layer2
                full((H, H)), full((1, H)),                # layer3
                full((H, Cpad)), full((1, Cpad)),          # out (lane-padded)
            ],
            out_specs=pl.BlockSpec((tb, Cpad), lambda i: (i, 0)),
        ),
        compiler_params=pltpu.CompilerParams(
            dimension_semantics=("parallel",)),
    )(x_in, params["w1"], params["b1"], params["w2"], params["b2"],
      params["w3"], params["b3"], params["w4"], params["b4"])

    if trim:
        # single fused slice (one copy) instead of two sequential slices
        if Bp != B or Cpad != num_classes:
            return out_padded[:B, :num_classes]
        return out_padded
    return out_padded if Bp == B else out_padded[:B]


def init_params(key, input_size, hidden, num_classes, cpad=128):
    """Deterministic init. Weights stored as (in, out) = PyTorch weight.T, cast to bf16.
    Biases stay f32 (added after the f32 accumulation)."""
    ks = jax.random.split(key, 8)
    scale = lambda fan_in: 1.0 / jnp.sqrt(fan_in)

    def lin(kw, kb, fan_in, fan_out):
        w = jax.random.uniform(kw, (fan_in, fan_out), jnp.float32,
                               -scale(fan_in), scale(fan_in))
        b = jax.random.uniform(kb, (1, fan_out), jnp.float32,
                               -scale(fan_in), scale(fan_in))
        return w, b

    w1, b1 = lin(ks[0], ks[1], input_size, hidden)
    w2, b2 = lin(ks[2], ks[3], hidden, hidden)
    w3, b3 = lin(ks[4], ks[5], hidden, hidden)
    w4, b4 = lin(ks[6], ks[7], hidden, num_classes)

    # pad the final layer's output dim to a full 128-lane width (zeros -> exact semantics)
    w4p = jnp.zeros((hidden, cpad), jnp.float32).at[:, :num_classes].set(w4)
    b4p = jnp.zeros((1, cpad), jnp.float32).at[:, :num_classes].set(b4)

    bf = jnp.bfloat16
    return dict(w1=w1.astype(bf), b1=b1, w2=w2.astype(bf), b2=b2,
                w3=w3.astype(bf), b3=b3, w4=w4p.astype(bf), b4=b4p)


def mlp_reference(x, params, num_classes):
    """Pure-JAX reference mirroring the kernel's numerics (bf16 operands, f32 accumulation)."""
    def lin(a, w, b):
        return jax.lax.dot(a.astype(jnp.bfloat16), w,
                           preferred_element_type=jnp.float32) + b
    h = jnp.maximum(lin(x, params["w1"], params["b1"]), 0.0)
    h = jnp.maximum(lin(h, params["w2"], params["b2"]), 0.0)
    h = jnp.maximum(lin(h, params["w3"], params["b3"]), 0.0)
    return lin(h, params["w4"], params["b4"])[:, :num_classes]


if __name__ == "__main__":
    # small shapes consistent with the module: MLP(input_size=256, num_classes=5)
    BATCH, INPUT_SIZE, HIDDEN, NUM_CLASSES = 8, 256, 128, 5

    key = jax.random.PRNGKey(0)
    kx, kp = jax.random.split(key)
    x = jax.random.normal(kx, (BATCH, INPUT_SIZE), jnp.float32)
    params = init_params(kp, INPUT_SIZE, HIDDEN, NUM_CLASSES)

    fwd = jax.jit(functools.partial(mlp_forward, num_classes=NUM_CLASSES))
    out = fwd(x, params)
    jax.block_until_ready(out)

    ref = mlp_reference(x, params, NUM_CLASSES)
    assert out.shape == (BATCH, NUM_CLASSES)
    assert jnp.allclose(out, ref, atol=1e-2, rtol=1e-2), (
        f"max abs err {jnp.max(jnp.abs(out - ref))}")

    print("KERNEL_OK")
</pallas_src>

<mosaic_0001>
module attributes {stable_mosaic.version = 11 : i64} {
  func.func @_mlp_kernel(%arg0: i32, %arg1: memref<16x256xf32, #tpu.memory_space<vmem>>, %arg2: memref<256x128xbf16, #tpu.memory_space<vmem>>, %arg3: memref<1x128xf32, #tpu.memory_space<vmem>>, %arg4: memref<128x128xbf16, #tpu.memory_space<vmem>>, %arg5: memref<1x128xf32, #tpu.memory_space<vmem>>, %arg6: memref<128x128xbf16, #tpu.memory_space<vmem>>, %arg7: memref<1x128xf32, #tpu.memory_space<vmem>>, %arg8: memref<128x128xbf16, #tpu.memory_space<vmem>>, %arg9: memref<1x128xf32, #tpu.memory_space<vmem>>, %arg10: memref<16x128xf32, #tpu.memory_space<vmem>>) attributes {dimension_semantics = [#tpu.dimension_semantics<parallel>], iteration_bounds = array<i64: 1>, scalar_prefetch = 0 : i64, scratch_operands = 0 : i64, tpu.core_type = #tpu.core_type<tc>, window_params = [{transform_indices = @transform_0, window_bounds = array<i64: 16, 256>}, {pipeline_mode = #tpu.pipeline_mode<synchronous>, transform_indices = @transform_1, window_bounds = array<i64: 256, 128>}, {pipeline_mode = #tpu.pipeline_mode<synchronous>, transform_indices = @transform_2, window_bounds = array<i64: 1, 128>}, {pipeline_mode = #tpu.pipeline_mode<synchronous>, transform_indices = @transform_3, window_bounds = array<i64: 128, 128>}, {pipeline_mode = #tpu.pipeline_mode<synchronous>, transform_indices = @transform_4, window_bounds = array<i64: 1, 128>}, {pipeline_mode = #tpu.pipeline_mode<synchronous>, transform_indices = @transform_5, window_bounds = array<i64: 128, 128>}, {pipeline_mode = #tpu.pipeline_mode<synchronous>, transform_indices = @transform_6, window_bounds = array<i64: 1, 128>}, {pipeline_mode = #tpu.pipeline_mode<synchronous>, transform_indices = @transform_7, window_bounds = array<i64: 128, 128>}, {pipeline_mode = #tpu.pipeline_mode<synchronous>, transform_indices = @transform_8, window_bounds = array<i64: 1, 128>}, {transform_indices = @transform_9, window_bounds = array<i64: 16, 128>}]} {
    %c0 = arith.constant 0 : index
    %c0_0 = arith.constant 0 : index
    %0 = vector.load %arg1[%c0, %c0_0] : memref<16x256xf32, #tpu.memory_space<vmem>>, vector<16x256xf32>
    %1 = arith.truncf %0 : vector<16x256xf32> to vector<16x256xbf16>
    %c0_1 = arith.constant 0 : index
    %c0_2 = arith.constant 0 : index
    %2 = vector.load %arg2[%c0_1, %c0_2] : memref<256x128xbf16, #tpu.memory_space<vmem>>, vector<256x128xbf16>
    %cst = arith.constant dense<0.000000e+00> : vector<16x128xf32>
    %3 = tpu.matmul %1, %2, %cst {dimension_numbers = #tpu.dot_dimension_numbers<[1], [0], [0], [1], [0, 0, 1, 1], [], []>} : vector<16x256xbf16>, vector<256x128xbf16>, vector<16x128xf32> -> vector<16x128xf32>
    %c0_3 = arith.constant 0 : index
    %c0_4 = arith.constant 0 : index
    %4 = vector.load %arg3[%c0_3, %c0_4] : memref<1x128xf32, #tpu.memory_space<vmem>>, vector<1x128xf32>
    %5 = vector.broadcast %4 : vector<1x128xf32> to vector<16x128xf32>
    %6 = arith.addf %3, %5 : vector<16x128xf32>
    %cst_5 = arith.constant 0.000000e+00 : f32
    %7 = vector.broadcast %cst_5 : f32 to vector<16x128xf32>
    %8 = arith.maximumf %6, %7 : vector<16x128xf32>
    %9 = arith.truncf %8 : vector<16x128xf32> to vector<16x128xbf16>
    %c0_6 = arith.constant 0 : index
    %c0_7 = arith.constant 0 : index
    %10 = vector.load %arg4[%c0_6, %c0_7] : memref<128x128xbf16, #tpu.memory_space<vmem>>, vector<128x128xbf16>
    %cst_8 = arith.constant dense<0.000000e+00> : vector<16x128xf32>
    %11 = tpu.matmul %9, %10, %cst_8 {dimension_numbers = #tpu.dot_dimension_numbers<[1], [0], [0], [1], [0, 0, 1, 1], [], []>} : vector<16x128xbf16>, vector<128x128xbf16>, vector<16x128xf32> -> vector<16x128xf32>
    %c0_9 = arith.constant 0 : index
    %c0_10 = arith.constant 0 : index
    %12 = vector.load %arg5[%c0_9, %c0_10] : memref<1x128xf32, #tpu.memory_space<vmem>>, vector<1x128xf32>
    %13 = vector.broadcast %12 : vector<1x128xf32> to vector<16x128xf32>
    %14 = arith.addf %11, %13 : vector<16x128xf32>
    %cst_11 = arith.constant 0.000000e+00 : f32
    %15 = vector.broadcast %cst_11 : f32 to vector<16x128xf32>
    %16 = arith.maximumf %14, %15 : vector<16x128xf32>
    %17 = arith.truncf %16 : vector<16x128xf32> to vector<16x128xbf16>
    %c0_12 = arith.constant 0 : index
    %c0_13 = arith.constant 0 : index
    %18 = vector.load %arg6[%c0_12, %c0_13] : memref<128x128xbf16, #tpu.memory_space<vmem>>, vector<128x128xbf16>
    %cst_14 = arith.constant dense<0.000000e+00> : vector<16x128xf32>
    %19 = tpu.matmul %17, %18, %cst_14 {dimension_numbers = #tpu.dot_dimension_numbers<[1], [0], [0], [1], [0, 0, 1, 1], [], []>} : vector<16x128xbf16>, vector<128x128xbf16>, vector<16x128xf32> -> vector<16x128xf32>
    %c0_15 = arith.constant 0 : index
    %c0_16 = arith.constant 0 : index
    %20 = vector.load %arg7[%c0_15, %c0_16] : memref<1x128xf32, #tpu.memory_space<vmem>>, vector<1x128xf32>
    %21 = vector.broadcast %20 : vector<1x128xf32> to vector<16x128xf32>
    %22 = arith.addf %19, %21 : vector<16x128xf32>
    %cst_17 = arith.constant 0.000000e+00 : f32
    %23 = vector.broadcast %cst_17 : f32 to vector<16x128xf32>
    %24 = arith.maximumf %22, %23 : vector<16x128xf32>
    %25 = arith.truncf %24 : vector<16x128xf32> to vector<16x128xbf16>
    %c0_18 = arith.constant 0 : index
    %c0_19 = arith.constant 0 : index
    %26 = vector.load %arg8[%c0_18, %c0_19] : memref<128x128xbf16, #tpu.memory_space<vmem>>, vector<128x128xbf16>
    %cst_20 = arith.constant dense<0.000000e+00> : vector<16x128xf32>
    %27 = tpu.matmul %25, %26, %cst_20 {dimension_numbers = #tpu.dot_dimension_numbers<[1], [0], [0], [1], [0, 0, 1, 1], [], []>} : vector<16x128xbf16>, vector<128x128xbf16>, vector<16x128xf32> -> vector<16x128xf32>
    %c0_21 = arith.constant 0 : index
    %c0_22 = arith.constant 0 : index
    %28 = vector.load %arg9[%c0_21, %c0_22] : memref<1x128xf32, #tpu.memory_space<vmem>>, vector<1x128xf32>
    %29 = vector.broadcast %28 : vector<1x128xf32> to vector<16x128xf32>
    %30 = arith.addf %27, %29 : vector<16x128xf32>
    %c0_23 = arith.constant 0 : index
    %c0_24 = arith.constant 0 : index
    %31 = vector.load %arg10[%c0_23, %c0_24] : memref<16x128xf32, #tpu.memory_space<vmem>>, vector<16x128xf32>
    tpu.vector_store %arg10[%c0_23, %c0_24], %30 {strides = array<i32>} : memref<16x128xf32, #tpu.memory_space<vmem>>, vector<16x128xf32>,
    return
  }
  func.func @transform_0(%arg0: i32) -> (i32, i32) {
    %c0_i32 = arith.constant 0 : i32
    %c0_i32_0 = arith.constant 0 : i32
    return %arg0, %c0_i32 : i32, i32
  }
  func.func @transform_1(%arg0: i32) -> (i32, i32) {
    %c0_i32 = arith.constant 0 : i32
    %c0_i32_0 = arith.constant 0 : i32
    %c0_i32_1 = arith.constant 0 : i32
    return %c0_i32, %c0_i32_0 : i32, i32
  }
  func.func @transform_2(%arg0: i32) -> (i32, i32) {
    %c0_i32 = arith.constant 0 : i32
    %c0_i32_0 = arith.constant 0 : i32
    %c0_i32_1 = arith.constant 0 : i32
    return %c0_i32, %c0_i32_0 : i32, i32
  }
  func.func @transform_3(%arg0: i32) -> (i32, i32) {
    %c0_i32 = arith.constant 0 : i32
    %c0_i32_0 = arith.constant 0 : i32
    %c0_i32_1 = arith.constant 0 : i32
    return %c0_i32, %c0_i32_0 : i32, i32
  }
  func.func @transform_4(%arg0: i32) -> (i32, i32) {
    %c0_i32 = arith.constant 0 : i32
    %c0_i32_0 = arith.constant 0 : i32
    %c0_i32_1 = arith.constant 0 : i32
    return %c0_i32, %c0_i32_0 : i32, i32
  }
  func.func @transform_5(%arg0: i32) -> (i32, i32) {
    %c0_i32 = arith.constant 0 : i32
    %c0_i32_0 = arith.constant 0 : i32
    %c0_i32_1 = arith.constant 0 : i32
    return %c0_i32, %c0_i32_0 : i32, i32
  }
  func.func @transform_6(%arg0: i32) -> (i32, i32) {
    %c0_i32 = arith.constant 0 : i32
    %c0_i32_0 = arith.constant 0 : i32
    %c0_i32_1 = arith.constant 0 : i32
    return %c0_i32, %c0_i32_0 : i32, i32
  }
  func.func @transform_7(%arg0: i32) -> (i32, i32) {
    %c0_i32 = arith.constant 0 : i32
    %c0_i32_0 = arith.constant 0 : i32
    %c0_i32_1 = arith.constant 0 : i32
    return %c0_i32, %c0_i32_0 : i32, i32
  }
  func.func @transform_8(%arg0: i32) -> (i32, i32) {
    %c0_i32 = arith.constant 0 : i32
    %c0_i32_0 = arith.constant 0 : i32
    %c0_i32_1 = arith.constant 0 : i32
    return %c0_i32, %c0_i32_0 : i32, i32
  }
  func.func @transform_9(%arg0: i32) -> (i32, i32) {
    %c0_i32 = arith.constant 0 : i32
    %c0_i32_0 = arith.constant 0 : i32
    return %arg0, %c0_i32 : i32, i32
  }
}

</mosaic_0001>

<llo_original>
// kernel: mlp_forward.1
$region0: #{mlp_forward.1}
  #allocation0 [shape = 'u32[]', space=smem, size = 0x4, offset = 0x4, fixed_abs, tag = 'smem constant byte address 0x4 - core index']
  #allocation1 [shape = 'u32[72,128]{1,0:T(1,128)}', space=vmem, size = 0x9000, scoped, tag = 'internal scratch']
  %s0 = inlined_call_operand.vmem [shape: f32[16,256], index: 0, kind: input, shape index: {}]
  %s1 = inlined_call_operand.hbm [shape: bf16[256,128], index: 1, kind: input, shape index: {}]
  %s2 = inlined_call_operand.vmem [shape: f32[1,128], index: 2, kind: input, shape index: {}]
  %s3 = inlined_call_operand.hbm [shape: bf16[128,128], index: 3, kind: input, shape index: {}]
  %s4 = inlined_call_operand.vmem [shape: f32[1,128], index: 4, kind: input, shape index: {}]
  %s5 = inlined_call_operand.hbm [shape: bf16[128,128], index: 5, kind: input, shape index: {}]
  %s6 = inlined_call_operand.vmem [shape: f32[1,128], index: 6, kind: input, shape index: {}]
  %s7 = inlined_call_operand.hbm [shape: bf16[128,128], index: 7, kind: input, shape index: {}]
  %s8 = inlined_call_operand.vmem [shape: f32[1,128], index: 8, kind: input, shape index: {}]
  %s9 = inlined_call_operand.vmem [shape: f32[16,128], index: 9, kind: output, shape index: {}]
  %s10 = sld [smem:[#allocation0]]
  $region62: #{mlp_forward.1} parent=0
    _
  %s12 = ssub.s32 1, %s10
  %s13 = scalar_select 0, %s12, %s10
  $region1: #{mlp_forward.1} parent=0
    #allocation2 [shape = 'u8[65536]{0}', space=vmem, size = 0x10000, scoped, tag = 'input window, operand 1, single buffered']
    #allocation3 [shape = 's32[1]{0}', space=sflag, size = 0x4, scoped, tag = 'scoped memory for mlp_forward.1']
    #allocation4 [shape = 'u8[32768]{0}', space=vmem, size = 0x8000, scoped, tag = 'input window, operand 3, single buffered']
    #allocation5 [shape = 's32[1]{0}', space=sflag, size = 0x4, scoped, tag = 'scoped memory for mlp_forward.1']
    #allocation6 [shape = 'u8[32768]{0}', space=vmem, size = 0x8000, scoped, tag = 'input window, operand 5, single buffered']
    #allocation7 [shape = 'u8[32768]{0}', space=vmem, size = 0x8000, scoped, tag = 'input window, operand 7, single buffered']
    #allocation8 [shape = 's32[1]{0}', space=sflag, size = 0x4, scoped, tag = 'scoped memory for mlp_forward.1']
    %14 = vsyncpa [#allocation3], 0
    %15 = vsyncpa [#allocation5], 0
    %16 = vsyncpa [#allocation8], 0
    // Predicated region
    $region2: #{mlp_forward.1} parent=1 // pred_check
      _
    $region3: #{mlp_forward.1} parent=1 // pred_check_branch
      %18 = sbr.rel (0) target = $region5
    $region4: #{mlp_forward.1} parent=1 // pred_region
      _
    $region5: #{mlp_forward.1} parent=1 // pred_fallthru
      _
    // Predicated region
    $region6: #{mlp_forward.1} parent=1 // pred_check
      _
    $region7: #{mlp_forward.1} parent=1 // pred_check_branch
      %20 = sbr.rel (0) target = $region9
    $region8: #{mlp_forward.1} parent=1 // pred_region
      %22 = vsyncadd [#allocation3], 0
      %s23 = sshll.u32 %s1, 4
      %s24 = int_to_ptr.hbm [resolvable:$true] %s23
      %s25 = sshll.u32 [#allocation2], 4
      %s26 = int_to_ptr.vmem [resolvable:$true] %s25
      %31 = dma.hbm_to_vmem [thread:$0]  %s24, 2048, %s26, [#allocation3], 64, 64, 4
    $region9: #{mlp_forward.1} parent=1 // pred_fallthru
      _
    // Predicated region
    $region10: #{mlp_forward.1} parent=1 // pred_check
      _
    $region11: #{mlp_forward.1} parent=1 // pred_check_branch
      %33 = sbr.rel (0) target = $region13
    $region12: #{mlp_forward.1} parent=1 // pred_region
      _
    $region13: #{mlp_forward.1} parent=1 // pred_fallthru
      _
    // Predicated region
    $region14: #{mlp_forward.1} parent=1 // pred_check
      _
    $region15: #{mlp_forward.1} parent=1 // pred_check_branch
      %35 = sbr.rel (0) target = $region17
    $region16: #{mlp_forward.1} parent=1 // pred_region
      %37 = vsyncadd [#allocation5], 0
      %s38 = sshll.u32 %s3, 4
      %s39 = int_to_ptr.hbm [resolvable:$true] %s38
      %s40 = sshll.u32 [#allocation4], 4
      %s41 = int_to_ptr.vmem [resolvable:$true] %s40
      %46 = dma.hbm_to_vmem [thread:$0]  %s39, 1024, %s41, [#allocation5], 64, 64, 4
    $region17: #{mlp_forward.1} parent=1 // pred_fallthru
      _
    // Predicated region
    $region18: #{mlp_forward.1} parent=1 // pred_check
      _
    $region19: #{mlp_forward.1} parent=1 // pred_check_branch
      %48 = sbr.rel (0) target = $region21
    $region20: #{mlp_forward.1} parent=1 // pred_region
      _
    $region21: #{mlp_forward.1} parent=1 // pred_fallthru
      _
    // Predicated region
    $region22: #{mlp_forward.1} parent=1 // pred_check
      _
    $region23: #{mlp_forward.1} parent=1 // pred_check_branch
      %50 = sbr.rel (0) target = $region25
    $region24: #{mlp_forward.1} parent=1 // pred_region
      %52 = vsyncadd [#allocation5], 0
      %s53 = sshll.u32 %s5, 4
      %s54 = int_to_ptr.hbm [resolvable:$true] %s53
      %s55 = sshll.u32 [#allocation6], 4
      %s56 = int_to_ptr.vmem [resolvable:$true] %s55
      %61 = dma.hbm_to_vmem [thread:$0]  %s54, 1024, %s56, [#allocation5], 64, 64, 4
    $region25: #{mlp_forward.1} parent=1 // pred_fallthru
      _
    // Predicated region
    $region26: #{mlp_forward.1} parent=1 // pred_check
      _
    $region27: #{mlp_forward.1} parent=1 // pred_check_branch
      %63 = sbr.rel (0) target = $region29
    $region28: #{mlp_forward.1} parent=1 // pred_region
      _
    $region29: #{mlp_forward.1} parent=1 // pred_fallthru
      _
    // Predicated region
    $region30: #{mlp_forward.1} parent=1 // pred_check
      _
    $region31: #{mlp_forward.1} parent=1 // pred_check_branch
      %65 = sbr.rel (0) target = $region33
    $region32: #{mlp_forward.1} parent=1 // pred_region
      %67 = vsyncadd [#allocation8], 0
      %s68 = sshll.u32 %s7, 4
      %s69 = int_to_ptr.hbm [resolvable:$true] %s68
      %s70 = sshll.u32 [#allocation7], 4
      %s71 = int_to_ptr.vmem [resolvable:$true] %s70
      %76 = dma.hbm_to_vmem [thread:$0]  %s69, 1024, %s71, [#allocation8], 64, 64, 4
    $region33: #{mlp_forward.1} parent=1 // pred_fallthru
      _
    // Predicated region
    $region34: #{mlp_forward.1} parent=1 // pred_check
      _
    $region35: #{mlp_forward.1} parent=1 // pred_check_branch
      %78 = sbr.rel (0) target = $region37
    $region36: #{mlp_forward.1} parent=1 // pred_region
      _
    $region37: #{mlp_forward.1} parent=1 // pred_fallthru
      _
    // Predicated region
    $region38: #{mlp_forward.1} parent=1 // pred_check
      _
    $region39: #{mlp_forward.1} parent=1 // pred_check_branch
      %80 = sbr.rel (0) target = $region41
    $region40: #{mlp_forward.1} parent=1 // pred_region
      %82 = dma.done [#allocation3], 2048
    $region41: #{mlp_forward.1} parent=1 // pred_fallthru
      _
    // Predicated region
    $region42: #{mlp_forward.1} parent=1 // pred_check
      _
    $region43: #{mlp_forward.1} parent=1 // pred_check_branch
      %84 = sbr.rel (0) target = $region45
    $region44: #{mlp_forward.1} parent=1 // pred_region
      %86 = dma.done [#allocation5], 1024
    $region45: #{mlp_forward.1} parent=1 // pred_fallthru
      _
    // Predicated region
    $region46: #{mlp_forward.1} parent=1 // pred_check
      _
    $region47: #{mlp_forward.1} parent=1 // pred_check_branch
      %88 = sbr.rel (0) target = $region49
    $region48: #{mlp_forward.1} parent=1 // pred_region
      %90 = dma.done [#allocation5], 1024
    $region49: #{mlp_forward.1} parent=1 // pred_fallthru
      _
    // Predicated region
    $region50: #{mlp_forward.1} parent=1 // pred_check
      _
    $region51: #{mlp_forward.1} parent=1 // pred_check_branch
      %92 = sbr.rel (0) target = $region53
    $region52: #{mlp_forward.1} parent=1 // pred_region
      %94 = dma.done [#allocation8], 1024
    $region53: #{mlp_forward.1} parent=1 // pred_fallthru
      _
    %v95 = vld [vmem:[%s0] sm:$0xff]
    %v96 = vld [vmem:[%s0 + $0x8] sm:$0xff]
    %v97 = vld [vmem:[%s0 + $0x10] sm:$0xff]
    %v98 = vld [vmem:[%s0 + $0x18] sm:$0xff]
    %v99 = vpack.c.bf16 %v97, %v95
    %v100 = vpack.c.bf16 %v98, %v96
    %v101 = vld [vmem:[#allocation2] sm:$0xf]
    %v102 = vld [vmem:[#allocation2 + $0x4] sm:$0xf]
    %v103 = vld [vmem:[#allocation2 + $0x8] sm:$0xf]
    %v104 = vld [vmem:[#allocation2 + $0xc] sm:$0xf]
    %v105 = vld [vmem:[#allocation2 + $0x10] sm:$0xf]
    %v106 = vld [vmem:[#allocation2 + $0x14] sm:$0xf]
    %v107 = vld [vmem:[#allocation2 + $0x18] sm:$0xf]
    %v108 = vld [vmem:[#allocation2 + $0x1c] sm:$0xf]
    %v109 = vld [vmem:[#allocation2 + $0x20] sm:$0xf]
    %v110 = vld [vmem:[#allocation2 + $0x24] sm:$0xf]
    %v111 = vld [vmem:[#allocation2 + $0x28] sm:$0xf]
    %v112 = vld [vmem:[#allocation2 + $0x2c] sm:$0xf]
    %v113 = vld [vmem:[#allocation2 + $0x30] sm:$0xf]
    %v114 = vld [vmem:[#allocation2 + $0x34] sm:$0xf]
    %v115 = vld [vmem:[#allocation2 + $0x38] sm:$0xf]
    %v116 = vld [vmem:[#allocation2 + $0x3c] sm:$0xf]
    %v117 = vld [vmem:[#allocation2 + $0x40] sm:$0xf]
    %v118 = vld [vmem:[#allocation2 + $0x44] sm:$0xf]
    %v119 = vld [vmem:[#allocation2 + $0x48] sm:$0xf]
    %v120 = vld [vmem:[#allocation2 + $0x4c] sm:$0xf]
    %v121 = vld [vmem:[#allocation2 + $0x50] sm:$0xf]
    %v122 = vld [vmem:[#allocation2 + $0x54] sm:$0xf]
    %v123 = vld [vmem:[#allocation2 + $0x58] sm:$0xf]
    %v124 = vld [vmem:[#allocation2 + $0x5c] sm:$0xf]
    %v125 = vld [vmem:[#allocation2 + $0x60] sm:$0xf]
    %v126 = vld [vmem:[#allocation2 + $0x64] sm:$0xf]
    %v127 = vld [vmem:[#allocation2 + $0x68] sm:$0xf]
    %v128 = vld [vmem:[#allocation2 + $0x6c] sm:$0xf]
    %v129 = vld [vmem:[#allocation2 + $0x70] sm:$0xf]
    %v130 = vld [vmem:[#allocation2 + $0x74] sm:$0xf]
    %v131 = vld [vmem:[#allocation2 + $0x78] sm:$0xf]
    %v132 = vld [vmem:[#allocation2 + $0x7c] sm:$0xf]
    %v133 = vld [vmem:[%s2] sm:$0x1]
    %v135 = vperm.slane %v133, 0
    %v169 = vunpack.c.l.b16 %v101
    %v170 = vunpack.c.l.b16 %v102
    %v171 = vunpack.c.l.b16 %v103
    %v172 = vunpack.c.l.b16 %v104
    %v173 = vunpack.c.l.b16 %v105
    %v174 = vunpack.c.l.b16 %v106
    %v175 = vunpack.c.l.b16 %v107
    %v176 = vunpack.c.l.b16 %v108
    %v177 = vunpack.c.l.b16 %v109
    %v178 = vunpack.c.l.b16 %v110
    %v179 = vunpack.c.l.b16 %v111
    %v180 = vunpack.c.l.b16 %v112
    %v181 = vunpack.c.l.b16 %v113
    %v182 = vunpack.c.l.b16 %v114
    %v183 = vunpack.c.l.b16 %v115
    %v184 = vunpack.c.l.b16 %v116
    %v185 = vunpack.c.l.b16 %v117
    %v186 = vunpack.c.l.b16 %v118
    %v187 = vunpack.c.l.b16 %v119
    %v188 = vunpack.c.l.b16 %v120
    %v189 = vunpack.c.l.b16 %v121
    %v190 = vunpack.c.l.b16 %v122
    %v191 = vunpack.c.l.b16 %v123
    %v192 = vunpack.c.l.b16 %v124
    %v193 = vunpack.c.l.b16 %v125
    %v194 = vunpack.c.l.b16 %v126
    %v195 = vunpack.c.l.b16 %v127
    %v196 = vunpack.c.l.b16 %v128
    %v197 = vunpack.c.l.b16 %v129
    %v198 = vunpack.c.l.b16 %v130
    %v199 = vunpack.c.l.b16 %v131
    %v200 = vunpack.c.l.b16 %v132
    %v201 = vpack.c.b16 %v170, %v169
    %v202 = vpack.c.b16 %v172, %v171
    %v203 = vpack.c.b16 %v174, %v173
    %v204 = vpack.c.b16 %v176, %v175
    %v205 = vpack.c.b16 %v178, %v177
    %v206 = vpack.c.b16 %v180, %v179
    %v207 = vpack.c.b16 %v182, %v181
    %v208 = vpack.c.b16 %v184, %v183
    %v209 = vpack.c.b16 %v186, %v185
    %v210 = vpack.c.b16 %v188, %v187
    %v211 = vpack.c.b16 %v190, %v189
    %v212 = vpack.c.b16 %v192, %v191
    %v213 = vpack.c.b16 %v194, %v193
    %v214 = vpack.c.b16 %v196, %v195
    %v215 = vpack.c.b16 %v198, %v197
    %v216 = vpack.c.b16 %v200, %v199
    %233 = vmatpush.bf16.msra.mxu0 %v208
    %234 = vmatpush.bf16.msra.mxu0 %v207
    %235 = vmatpush.bf16.msra.mxu0 %v206
    %236 = vmatpush.bf16.msra.mxu0 %v205
    %237 = vmatpush.bf16.msra.mxu0 %v204
    %238 = vmatpush.bf16.msra.mxu0 %v203
    %239 = vmatpush.bf16.msra.mxu0 %v202
    %240 = vmatpush.bf16.msra.mxu0 %v201
    %241 = vmatmul.bf16.gmra.mxu0 %v99
    %v242 = vpop.f32.mrf.mxu0
    %v243 = vadd.f32 %v135, %v242
    %v244 = vpop.f32.mrf.mxu0
    %v245 = vadd.f32 %v135, %v244
    %246 = vdwg.mxu0
    %247 = vmatpush.bf16.msra.mxu0 %v216
    %248 = vmatpush.bf16.msra.mxu0 %v215
    %249 = vmatpush.bf16.msra.mxu0 %v214
    %250 = vmatpush.bf16.msra.mxu0 %v213
    %251 = vmatpush.bf16.msra.mxu0 %v212
    %252 = vmatpush.bf16.msra.mxu0 %v211
    %253 = vmatpush.bf16.msra.mxu0 %v210
    %254 = vmatpush.bf16.msra.mxu0 %v209
    %255 = vmatmul.bf16.gmra.mxu0 %v100
    %v256 = vpop.f32.mrf.mxu0
    %v257 = vadd.f32 %v243, %v256
    %v258 = vpop.f32.mrf.mxu0
    %v259 = vadd.f32 %v245, %v258
    %260 = vdwg.mxu0
    %v261 = vmax.f32 %v257, 0.0
    %v262 = vmax.f32 %v259, 0.0
    %v263 = vpack.c.bf16 %v262, %v261
    %v264 = vld [vmem:[#allocation4] sm:$0xf]
    %v265 = vld [vmem:[#allocation4 + $0x4] sm:$0xf]
    %v266 = vld [vmem:[#allocation4 + $0x8] sm:$0xf]
    %v267 = vld [vmem:[#allocation4 + $0xc] sm:$0xf]
    %v268 = vld [vmem:[#allocation4 + $0x10] sm:$0xf]
    %v269 = vld [vmem:[#allocation4 + $0x14] sm:$0xf]
    %v270 = vld [vmem:[#allocation4 + $0x18] sm:$0xf]
    %v271 = vld [vmem:[#allocation4 + $0x1c] sm:$0xf]
    %v272 = vld [vmem:[#allocation4 + $0x20] sm:$0xf]
    %v273 = vld [vmem:[#allocation4 + $0x24] sm:$0xf]
    %v274 = vld [vmem:[#allocation4 + $0x28] sm:$0xf]
    %v275 = vld [vmem:[#allocation4 + $0x2c] sm:$0xf]
    %v276 = vld [vmem:[#allocation4 + $0x30] sm:$0xf]
    %v277 = vld [vmem:[#allocation4 + $0x34] sm:$0xf]
    %v278 = vld [vmem:[#allocation4 + $0x38] sm:$0xf]
    %v279 = vld [vmem:[#allocation4 + $0x3c] sm:$0xf]
    %v280 = vld [vmem:[%s4] sm:$0x1]
    %v282 = vperm.slane %v280, 0
    %v300 = vunpack.c.l.b16 %v264
    %v301 = vunpack.c.l.b16 %v265
    %v302 = vunpack.c.l.b16 %v266
    %v303 = vunpack.c.l.b16 %v267
    %v304 = vunpack.c.l.b16 %v268
    %v305 = vunpack.c.l.b16 %v269
    %v306 = vunpack.c.l.b16 %v270
    %v307 = vunpack.c.l.b16 %v271
    %v308 = vunpack.c.l.b16 %v272
    %v309 = vunpack.c.l.b16 %v273
    %v310 = vunpack.c.l.b16 %v274
    %v311 = vunpack.c.l.b16 %v275
    %v312 = vunpack.c.l.b16 %v276
    %v313 = vunpack.c.l.b16 %v277
    %v314 = vunpack.c.l.b16 %v278
    %v315 = vunpack.c.l.b16 %v279
    %v316 = vpack.c.b16 %v301, %v300
    %v317 = vpack.c.b16 %v303, %v302
    %v318 = vpack.c.b16 %v305, %v304
    %v319 = vpack.c.b16 %v307, %v306
    %v320 = vpack.c.b16 %v309, %v308
    %v321 = vpack.c.b16 %v311, %v310
    %v322 = vpack.c.b16 %v313, %v312
    %v323 = vpack.c.b16 %v315, %v314
    %332 = vmatpush.bf16.msra.mxu0 %v323
    %333 = vmatpush.bf16.msra.mxu0 %v322
    %334 = vmatpush.bf16.msra.mxu0 %v321
    %335 = vmatpush.bf16.msra.mxu0 %v320
    %336 = vmatpush.bf16.msra.mxu0 %v319
    %337 = vmatpush.bf16.msra.mxu0 %v318
    %338 = vmatpush.bf16.msra.mxu0 %v317
    %339 = vmatpush.bf16.msra.mxu0 %v316
    %340 = vmatmul.bf16.gmra.mxu0 %v263
    %v341 = vpop.f32.mrf.mxu0
    %v342 = vadd.f32 %v282, %v341
    %v343 = vpop.f32.mrf.mxu0
    %v344 = vadd.f32 %v282, %v343
    %345 = vdwg.mxu0
    %v346 = vmax.f32 %v342, 0.0
    %v347 = vmax.f32 %v344, 0.0
    %v348 = vpack.c.bf16 %v347, %v346
    %v349 = vld [vmem:[#allocation6] sm:$0xf]
    %v350 = vld [vmem:[#allocation6 + $0x4] sm:$0xf]
    %v351 = vld [vmem:[#allocation6 + $0x8] sm:$0xf]
    %v352 = vld [vmem:[#allocation6 + $0xc] sm:$0xf]
    %v353 = vld [vmem:[#allocation6 + $0x10] sm:$0xf]
    %v354 = vld [vmem:[#allocation6 + $0x14] sm:$0xf]
    %v355 = vld [vmem:[#allocation6 + $0x18] sm:$0xf]
    %v356 = vld [vmem:[#allocation6 + $0x1c] sm:$0xf]
    %v357 = vld [vmem:[#allocation6 + $0x20] sm:$0xf]
    %v358 = vld [vmem:[#allocation6 + $0x24] sm:$0xf]
    %v359 = vld [vmem:[#allocation6 + $0x28] sm:$0xf]
    %v360 = vld [vmem:[#allocation6 + $0x2c] sm:$0xf]
    %v361 = vld [vmem:[#allocation6 + $0x30] sm:$0xf]
    %v362 = vld [vmem:[#allocation6 + $0x34] sm:$0xf]
    %v363 = vld [vmem:[#allocation6 + $0x38] sm:$0xf]
    %v364 = vld [vmem:[#allocation6 + $0x3c] sm:$0xf]
    %v365 = vld [vmem:[%s6] sm:$0x1]
    %v367 = vperm.slane %v365, 0
    %v385 = vunpack.c.l.b16 %v349
    %v386 = vunpack.c.l.b16 %v350
    %v387 = vunpack.c.l.b16 %v351
    %v388 = vunpack.c.l.b16 %v352
    %v389 = vunpack.c.l.b16 %v353
    %v390 = vunpack.c.l.b16 %v354
    %v391 = vunpack.c.l.b16 %v355
    %v392 = vunpack.c.l.b16 %v356
    %v393 = vunpack.c.l.b16 %v357
    %v394 = vunpack.c.l.b16 %v358
    %v395 = vunpack.c.l.b16 %v359
    %v396 = vunpack.c.l.b16 %v360
    %v397 = vunpack.c.l.b16 %v361
    %v398 = vunpack.c.l.b16 %v362
    %v399 = vunpack.c.l.b16 %v363
    %v400 = vunpack.c.l.b16 %v364
    %v401 = vpack.c.b16 %v386, %v385
    %v402 = vpack.c.b16 %v388, %v387
    %v403 = vpack.c.b16 %v390, %v389
    %v404 = vpack.c.b16 %v392, %v391
    %v405 = vpack.c.b16 %v394, %v393
    %v406 = vpack.c.b16 %v396, %v395
    %v407 = vpack.c.b16 %v398, %v397
    %v408 = vpack.c.b16 %v400, %v399
    %417 = vmatpush.bf16.msra.mxu0 %v408
    %418 = vmatpush.bf16.msra.mxu0 %v407
    %419 = vmatpush.bf16.msra.mxu0 %v406
    %420 = vmatpush.bf16.msra.mxu0 %v405
    %421 = vmatpush.bf16.msra.mxu0 %v404
    %422 = vmatpush.bf16.msra.mxu0 %v403
    %423 = vmatpush.bf16.msra.mxu0 %v402
    %424 = vmatpush.bf16.msra.mxu0 %v401
    %425 = vmatmul.bf16.gmra.mxu0 %v348
    %v426 = vpop.f32.mrf.mxu0
    %v427 = vadd.f32 %v367, %v426
    %v428 = vpop.f32.mrf.mxu0
    %v429 = vadd.f32 %v367, %v428
    %430 = vdwg.mxu0
    %v431 = vmax.f32 %v427, 0.0
    %v432 = vmax.f32 %v429, 0.0
    %v433 = vpack.c.bf16 %v432, %v431
    %v434 = vld [vmem:[#allocation7] sm:$0xf]
    %v435 = vld [vmem:[#allocation7 + $0x4] sm:$0xf]
    %v436 = vld [vmem:[#allocation7 + $0x8] sm:$0xf]
    %v437 = vld [vmem:[#allocation7 + $0xc] sm:$0xf]
    %v438 = vld [vmem:[#allocation7 + $0x10] sm:$0xf]
    %v439 = vld [vmem:[#allocation7 + $0x14] sm:$0xf]
    %v440 = vld [vmem:[#allocation7 + $0x18] sm:$0xf]
    %v441 = vld [vmem:[#allocation7 + $0x1c] sm:$0xf]
    %v442 = vld [vmem:[#allocation7 + $0x20] sm:$0xf]
    %v443 = vld [vmem:[#allocation7 + $0x24] sm:$0xf]
    %v444 = vld [vmem:[#allocation7 + $0x28] sm:$0xf]
    %v445 = vld [vmem:[#allocation7 + $0x2c] sm:$0xf]
    %v446 = vld [vmem:[#allocation7 + $0x30] sm:$0xf]
    %v447 = vld [vmem:[#allocation7 + $0x34] sm:$0xf]
    %v448 = vld [vmem:[#allocation7 + $0x38] sm:$0xf]
    %v449 = vld [vmem:[#allocation7 + $0x3c] sm:$0xf]
    %v450 = vld [vmem:[%s8] sm:$0x1]
    %v452 = vperm.slane %v450, 0
    %v470 = vunpack.c.l.b16 %v434
    %v471 = vunpack.c.l.b16 %v435
    %v472 = vunpack.c.l.b16 %v436
    %v473 = vunpack.c.l.b16 %v437
    %v474 = vunpack.c.l.b16 %v438
    %v475 = vunpack.c.l.b16 %v439
    %v476 = vunpack.c.l.b16 %v440
    %v477 = vunpack.c.l.b16 %v441
    %v478 = vunpack.c.l.b16 %v442
    %v479 = vunpack.c.l.b16 %v443
    %v480 = vunpack.c.l.b16 %v444
    %v481 = vunpack.c.l.b16 %v445
    %v482 = vunpack.c.l.b16 %v446
    %v483 = vunpack.c.l.b16 %v447
    %v484 = vunpack.c.l.b16 %v448
    %v485 = vunpack.c.l.b16 %v449
    %v486 = vpack.c.b16 %v471, %v470
    %v487 = vpack.c.b16 %v473, %v472
    %v488 = vpack.c.b16 %v475, %v474
    %v489 = vpack.c.b16 %v477, %v476
    %v490 = vpack.c.b16 %v479, %v478
    %v491 = vpack.c.b16 %v481, %v480
    %v492 = vpack.c.b16 %v483, %v482
    %v493 = vpack.c.b16 %v485, %v484
    %502 = vmatpush.bf16.msra.mxu0 %v493
    %503 = vmatpush.bf16.msra.mxu0 %v492
    %504 = vmatpush.bf16.msra.mxu0 %v491
    %505 = vmatpush.bf16.msra.mxu0 %v490
    %506 = vmatpush.bf16.msra.mxu0 %v489
    %507 = vmatpush.bf16.msra.mxu0 %v488
    %508 = vmatpush.bf16.msra.mxu0 %v487
    %509 = vmatpush.bf16.msra.mxu0 %v486
    %510 = vmatmul.bf16.gmra.mxu0 %v433
    %v511 = vpop.f32.mrf.mxu0
    %v512 = vadd.f32 %v452, %v511
    %v513 = vpop.f32.mrf.mxu0
    %v514 = vadd.f32 %v452, %v513
    %515 = vdwg.mxu0
    %516 = vst [vmem:[%s9] sm:$0xff] %v512
    %517 = vst [vmem:[%s9 + $0x8] sm:$0xff] %v514
    // Predicated region
    $region54: #{mlp_forward.1} parent=1 // pred_check
      _
    $region55: #{mlp_forward.1} parent=1 // pred_check_branch
      %519 = sbr.rel (0) target = $region57
    $region56: #{mlp_forward.1} parent=1 // pred_region
      _
    $region57: #{mlp_forward.1} parent=1 // pred_fallthru
      _
    // Predicated region
    $region58: #{mlp_forward.1} parent=1 // pred_check
      _
    $region59: #{mlp_forward.1} parent=1 // pred_check_branch
      %521 = sbr.rel (0) target = $region61
    $region60: #{mlp_forward.1} parent=1 // pred_region
      _
    $region61: #{mlp_forward.1} parent=1 // pred_fallthru
      _
    %522 = vsyncpa [#allocation3], 1
    %523 = vsyncpa [#allocation5], 1
    %524 = vsyncpa [#allocation8], 1

</llo_original>
